<compile_context>
chip_gen: v7x
topology: tpu7x:2x2x1
jax: 0.10.0
libtpu: 0.0.40
codegen_flags: <defaults>
</compile_context>

<pallas_src>
import jax
import jax.numpy as jnp
from jax import lax
from jax.experimental import pallas as pl
from jax.experimental.pallas import tpu as pltpu

SUBLANE = 8
LANE = 128


def mlp_kernel(x_ref,
               w1_ref, b1_ref,
               w2_ref, b2_ref,
               w3_ref, b3_ref,
               w4t_ref, b4t_ref,
               o_ref):
    # x arrives f32; cast to bf16 in-kernel (keeps the wrapper free of an extra HBM pass).
    x = x_ref[...].astype(jnp.bfloat16)

    # Layers 1-3: bf16 MXU inputs, f32 accumulation; bias + ReLU in f32 on the VPU.
    h = jnp.dot(x, w1_ref[...], preferred_element_type=jnp.float32)
    h = jnp.maximum(h + b1_ref[...], 0.0).astype(jnp.bfloat16)

    h = jnp.dot(h, w2_ref[...], preferred_element_type=jnp.float32)
    h = jnp.maximum(h + b2_ref[...], 0.0).astype(jnp.bfloat16)

    h = jnp.dot(h, w3_ref[...], preferred_element_type=jnp.float32)
    h = jnp.maximum(h + b3_ref[...], 0.0)            # keep layer-4 input in f32 (tiny matmul)

    # Layer 4 emitted transposed: (out_pad, hidden) . (tile_b, hidden)^T -> (out_pad, tile_b).
    # out_dim lives on sublanes, batch on lanes -> lane-dense, ~16x less output HBM traffic.
    out_t = lax.dot_general(w4t_ref[...], h,
                            dimension_numbers=(((1,), (1,)), ((), ())),
                            preferred_element_type=jnp.float32)
    o_ref[...] = (out_t + b4t_ref[...]).astype(o_ref.dtype)


def _choose_tile_b(B):
    if B <= 256:
        # Single grid step; round rows to 16 for bf16 sublane packing.
        return ((B + 15) // 16) * 16
    # Large batches: at least 2 grid steps (v7x megacore), tiles a multiple of 256, cap 2048.
    half = (B + 1) // 2
    return min(2048, ((half + 255) // 256) * 256)


def prepare_params(params):
    """One-time weight prep (casts / pads / transposes) hoisted out of the per-call path."""
    out_dim = params["w4"].shape[1]
    out_pad = ((out_dim + SUBLANE - 1) // SUBLANE) * SUBLANE
    return {
        "w1": params["w1"].astype(jnp.bfloat16),
        "w2": params["w2"].astype(jnp.bfloat16),
        "w3": params["w3"].astype(jnp.bfloat16),
        "b1": params["b1"],
        "b2": params["b2"],
        "b3": params["b3"],
        # Layer 4 stays f32 (tiny) and is stored transposed + sublane-padded: (out_pad, hidden).
        "w4t": jnp.pad(params["w4"], ((0, 0), (0, out_pad - out_dim))).T,
        "b4t": jnp.pad(params["b4"], ((0, 0), (0, out_pad - out_dim))).T,   # (out_pad, 1)
        "out_dim": out_dim,
    }


def mlp_forward(x, prepared, *, tile_b=None):
    """x: (B, input_dim) f32.  prepared: output of prepare_params()."""
    B, in_dim = x.shape
    w1, b1 = prepared["w1"], prepared["b1"]
    w2, b2 = prepared["w2"], prepared["b2"]
    w3, b3 = prepared["w3"], prepared["b3"]
    w4t, b4t = prepared["w4t"], prepared["b4t"]
    hidden = w1.shape[1]
    out_pad = w4t.shape[0]
    out_dim = prepared["out_dim"]

    if tile_b is None:
        tile_b = _choose_tile_b(B)
    B_pad = ((B + tile_b - 1) // tile_b) * tile_b
    x_p = x if B_pad == B else jnp.pad(x, ((0, B_pad - B), (0, 0)))

    grid = (B_pad // tile_b,)

    def resident(arr):
        # Constant index_map -> DMA'd once, resident across grid steps.
        return pl.BlockSpec(arr.shape, lambda i: (0, 0))

    flops = 2 * B_pad * (in_dim * hidden + 2 * hidden * hidden + hidden * out_pad)
    w_bytes = sum(int(a.size) * a.dtype.itemsize
                  for a in (w1, b1, w2, b2, w3, b3, w4t, b4t))
    bytes_accessed = x_p.size * 4 + out_pad * B_pad * 4 + w_bytes

    # VMEM sized from the actual tile footprint (double-buffered x/out + resident weights
    # + f32 intermediates), with 2x headroom.
    vmem_need = (2 * (tile_b * in_dim * 4 + out_pad * tile_b * 4 + w_bytes)
                 + 4 * tile_b * hidden * 4)
    vmem_limit = int(min(100 * 1024 * 1024, max(4 * 1024 * 1024, 2 * vmem_need)))

    out_t = pl.pallas_call(
        mlp_kernel,
        out_shape=jax.ShapeDtypeStruct((out_pad, B_pad), jnp.float32),
        grid_spec=pltpu.PrefetchScalarGridSpec(
            num_scalar_prefetch=0,
            grid=grid,
            in_specs=[
                pl.BlockSpec((tile_b, in_dim), lambda i: (i, 0)),   # x tile (batch-tiled, f32)
                resident(w1), resident(b1),
                resident(w2), resident(b2),
                resident(w3), resident(b3),
                resident(w4t), resident(b4t),
            ],
            out_specs=pl.BlockSpec((out_pad, tile_b), lambda i: (0, i)),
        ),
        compiler_params=pltpu.CompilerParams(
            dimension_semantics=("parallel",),      # megacore-shardable batch axis (v7x)
            vmem_limit_bytes=vmem_limit,
        ),
        cost_estimate=pl.CostEstimate(
            flops=int(flops), transcendentals=0, bytes_accessed=int(bytes_accessed)),
    )(x_p, w1, b1, w2, b2, w3, b3, w4t, b4t)

    # Transposed layout: this slice reads only out_pad * B_pad (= 8*B_pad) elements.
    return out_t[:out_dim, :B].T


def init_params(key, input_dim, hidden_dim, output_dim):
    """Deterministic init matching nn.Linear shapes (weights stored transposed as (in, out))."""
    dims = [(input_dim, hidden_dim),
            (hidden_dim, hidden_dim),
            (hidden_dim, hidden_dim),
            (hidden_dim, output_dim)]
    params = {}
    keys = jax.random.split(key, 2 * len(dims))
    for idx, (fan_in, fan_out) in enumerate(dims):
        bound = 1.0 / jnp.sqrt(fan_in)
        w = jax.random.uniform(keys[2 * idx], (fan_in, fan_out),
                               minval=-bound, maxval=bound, dtype=jnp.float32)
        b = jax.random.uniform(keys[2 * idx + 1], (1, fan_out),
                               minval=-bound, maxval=bound, dtype=jnp.float32)
        params[f"w{idx + 1}"] = w
        params[f"b{idx + 1}"] = b
    return params


def mlp_reference(x, params):
    """Pure-f32 JAX reference (matches the PyTorch module in eval mode)."""
    h = jnp.maximum(x @ params["w1"] + params["b1"], 0.0)
    h = jnp.maximum(h @ params["w2"] + params["b2"], 0.0)
    h = jnp.maximum(h @ params["w3"] + params["b3"], 0.0)
    return h @ params["w4"] + params["b4"]


if __name__ == "__main__":
    # Small shapes consistent with the module: batch=16, input_dim=32,
    # hidden_dim=256 (module default), output_dim=3.
    B, IN, HID, OUT = 16, 32, 256, 3

    key = jax.random.PRNGKey(0)
    k_x, k_p, k_x2 = jax.random.split(key, 3)
    x = jax.random.normal(k_x, (B, IN), dtype=jnp.float32)
    params = init_params(k_p, IN, HID, OUT)
    prepared = prepare_params(params)     # one-time weight prep (hoisted out of forward)

    out = jax.block_until_ready(mlp_forward(x, prepared))      # single grid step
    ref = mlp_reference(x, params)
    assert out.shape == (B, OUT), out.shape
    # bf16 matmul inputs (layers 1-3) with f32 accumulation -> loose tolerance vs f32 ref.
    assert jnp.allclose(out, ref, atol=5e-2, rtol=5e-2), "mismatch vs JAX reference (B=16)"

    # Exercise the padded, multi-step (grid >= 2) path as well.
    B2 = 300
    x2 = jax.random.normal(k_x2, (B2, IN), dtype=jnp.float32)
    out2 = jax.block_until_ready(mlp_forward(x2, prepared))
    ref2 = mlp_reference(x2, params)
    assert out2.shape == (B2, OUT), out2.shape
    assert jnp.allclose(out2, ref2, atol=5e-2, rtol=5e-2), "mismatch vs JAX reference (B=300)"

    print("KERNEL_OK")
</pallas_src>

<mosaic_0001>
module attributes {stable_mosaic.version = 11 : i64} {
  func.func @mlp_kernel(%arg0: i32, %arg1: memref<16x32xf32, #tpu.memory_space<vmem>>, %arg2: memref<32x256xbf16, #tpu.memory_space<vmem>>, %arg3: memref<1x256xf32, #tpu.memory_space<vmem>>, %arg4: memref<256x256xbf16, #tpu.memory_space<vmem>>, %arg5: memref<1x256xf32, #tpu.memory_space<vmem>>, %arg6: memref<256x256xbf16, #tpu.memory_space<vmem>>, %arg7: memref<1x256xf32, #tpu.memory_space<vmem>>, %arg8: memref<8x256xf32, #tpu.memory_space<vmem>>, %arg9: memref<8x1xf32, #tpu.memory_space<vmem>>, %arg10: memref<8x16xf32, #tpu.memory_space<vmem>>) attributes {dimension_semantics = [#tpu.dimension_semantics<parallel>], iteration_bounds = array<i64: 1>, scalar_prefetch = 0 : i64, scratch_operands = 0 : i64, tpu.core_type = #tpu.core_type<tc>, window_params = [{transform_indices = @transform_0, window_bounds = array<i64: 16, 32>}, {pipeline_mode = #tpu.pipeline_mode<synchronous>, transform_indices = @transform_1, window_bounds = array<i64: 32, 256>}, {pipeline_mode = #tpu.pipeline_mode<synchronous>, transform_indices = @transform_2, window_bounds = array<i64: 1, 256>}, {pipeline_mode = #tpu.pipeline_mode<synchronous>, transform_indices = @transform_3, window_bounds = array<i64: 256, 256>}, {pipeline_mode = #tpu.pipeline_mode<synchronous>, transform_indices = @transform_4, window_bounds = array<i64: 1, 256>}, {pipeline_mode = #tpu.pipeline_mode<synchronous>, transform_indices = @transform_5, window_bounds = array<i64: 256, 256>}, {pipeline_mode = #tpu.pipeline_mode<synchronous>, transform_indices = @transform_6, window_bounds = array<i64: 1, 256>}, {pipeline_mode = #tpu.pipeline_mode<synchronous>, transform_indices = @transform_7, window_bounds = array<i64: 8, 256>}, {pipeline_mode = #tpu.pipeline_mode<synchronous>, transform_indices = @transform_8, window_bounds = array<i64: 8, 1>}, {transform_indices = @transform_9, window_bounds = array<i64: 8, 16>}]} {
    %c0 = arith.constant 0 : index
    %c0_0 = arith.constant 0 : index
    %0 = vector.load %arg1[%c0, %c0_0] : memref<16x32xf32, #tpu.memory_space<vmem>>, vector<16x32xf32>
    %1 = arith.truncf %0 : vector<16x32xf32> to vector<16x32xbf16>
    %c0_1 = arith.constant 0 : index
    %c0_2 = arith.constant 0 : index
    %2 = vector.load %arg2[%c0_1, %c0_2] : memref<32x256xbf16, #tpu.memory_space<vmem>>, vector<32x256xbf16>
    %cst = arith.constant dense<0.000000e+00> : vector<16x256xf32>
    %3 = tpu.matmul %1, %2, %cst {dimension_numbers = #tpu.dot_dimension_numbers<[1], [0], [0], [1], [0, 0, 1, 1], [], []>} : vector<16x32xbf16>, vector<32x256xbf16>, vector<16x256xf32> -> vector<16x256xf32>
    %c0_3 = arith.constant 0 : index
    %c0_4 = arith.constant 0 : index
    %4 = vector.load %arg3[%c0_3, %c0_4] : memref<1x256xf32, #tpu.memory_space<vmem>>, vector<1x256xf32>
    %5 = vector.broadcast %4 : vector<1x256xf32> to vector<16x256xf32>
    %6 = arith.addf %3, %5 : vector<16x256xf32>
    %cst_5 = arith.constant 0.000000e+00 : f32
    %7 = vector.broadcast %cst_5 : f32 to vector<16x256xf32>
    %8 = arith.maximumf %6, %7 : vector<16x256xf32>
    %9 = arith.truncf %8 : vector<16x256xf32> to vector<16x256xbf16>
    %c0_6 = arith.constant 0 : index
    %c0_7 = arith.constant 0 : index
    %10 = vector.load %arg4[%c0_6, %c0_7] : memref<256x256xbf16, #tpu.memory_space<vmem>>, vector<256x256xbf16>
    %cst_8 = arith.constant dense<0.000000e+00> : vector<16x256xf32>
    %11 = tpu.matmul %9, %10, %cst_8 {dimension_numbers = #tpu.dot_dimension_numbers<[1], [0], [0], [1], [0, 0, 1, 1], [], []>} : vector<16x256xbf16>, vector<256x256xbf16>, vector<16x256xf32> -> vector<16x256xf32>
    %c0_9 = arith.constant 0 : index
    %c0_10 = arith.constant 0 : index
    %12 = vector.load %arg5[%c0_9, %c0_10] : memref<1x256xf32, #tpu.memory_space<vmem>>, vector<1x256xf32>
    %13 = vector.broadcast %12 : vector<1x256xf32> to vector<16x256xf32>
    %14 = arith.addf %11, %13 : vector<16x256xf32>
    %cst_11 = arith.constant 0.000000e+00 : f32
    %15 = vector.broadcast %cst_11 : f32 to vector<16x256xf32>
    %16 = arith.maximumf %14, %15 : vector<16x256xf32>
    %17 = arith.truncf %16 : vector<16x256xf32> to vector<16x256xbf16>
    %c0_12 = arith.constant 0 : index
    %c0_13 = arith.constant 0 : index
    %18 = vector.load %arg6[%c0_12, %c0_13] : memref<256x256xbf16, #tpu.memory_space<vmem>>, vector<256x256xbf16>
    %cst_14 = arith.constant dense<0.000000e+00> : vector<16x256xf32>
    %19 = tpu.matmul %17, %18, %cst_14 {dimension_numbers = #tpu.dot_dimension_numbers<[1], [0], [0], [1], [0, 0, 1, 1], [], []>} : vector<16x256xbf16>, vector<256x256xbf16>, vector<16x256xf32> -> vector<16x256xf32>
    %c0_15 = arith.constant 0 : index
    %c0_16 = arith.constant 0 : index
    %20 = vector.load %arg7[%c0_15, %c0_16] : memref<1x256xf32, #tpu.memory_space<vmem>>, vector<1x256xf32>
    %21 = vector.broadcast %20 : vector<1x256xf32> to vector<16x256xf32>
    %22 = arith.addf %19, %21 : vector<16x256xf32>
    %cst_17 = arith.constant 0.000000e+00 : f32
    %23 = vector.broadcast %cst_17 : f32 to vector<16x256xf32>
    %24 = arith.maximumf %22, %23 : vector<16x256xf32>
    %c0_18 = arith.constant 0 : index
    %c0_19 = arith.constant 0 : index
    %25 = vector.load %arg8[%c0_18, %c0_19] : memref<8x256xf32, #tpu.memory_space<vmem>>, vector<8x256xf32>
    %cst_20 = arith.constant dense<0.000000e+00> : vector<8x16xf32>
    %26 = tpu.matmul %25, %24, %cst_20 {dimension_numbers = #tpu.dot_dimension_numbers<[1], [1], [0], [0], [0, 0, 1, 0], [], []>} : vector<8x256xf32>, vector<16x256xf32>, vector<8x16xf32> -> vector<8x16xf32>
    %c0_21 = arith.constant 0 : index
    %c0_22 = arith.constant 0 : index
    %27 = vector.load %arg9[%c0_21, %c0_22] : memref<8x1xf32, #tpu.memory_space<vmem>>, vector<8x1xf32>
    %28 = vector.broadcast %27 : vector<8x1xf32> to vector<8x16xf32>
    %29 = arith.addf %26, %28 : vector<8x16xf32>
    %c0_23 = arith.constant 0 : index
    %c0_24 = arith.constant 0 : index
    %30 = vector.load %arg10[%c0_23, %c0_24] : memref<8x16xf32, #tpu.memory_space<vmem>>, vector<8x16xf32>
    tpu.vector_store %arg10[%c0_23, %c0_24], %29 {strides = array<i32>} : memref<8x16xf32, #tpu.memory_space<vmem>>, vector<8x16xf32>,
    return
  }
  func.func @transform_0(%arg0: i32) -> (i32, i32) {
    %c0_i32 = arith.constant 0 : i32
    %c0_i32_0 = arith.constant 0 : i32
    return %arg0, %c0_i32 : i32, i32
  }
  func.func @transform_1(%arg0: i32) -> (i32, i32) {
    %c0_i32 = arith.constant 0 : i32
    %c0_i32_0 = arith.constant 0 : i32
    %c0_i32_1 = arith.constant 0 : i32
    return %c0_i32, %c0_i32_0 : i32, i32
  }
  func.func @transform_2(%arg0: i32) -> (i32, i32) {
    %c0_i32 = arith.constant 0 : i32
    %c0_i32_0 = arith.constant 0 : i32
    %c0_i32_1 = arith.constant 0 : i32
    return %c0_i32, %c0_i32_0 : i32, i32
  }
  func.func @transform_3(%arg0: i32) -> (i32, i32) {
    %c0_i32 = arith.constant 0 : i32
    %c0_i32_0 = arith.constant 0 : i32
    %c0_i32_1 = arith.constant 0 : i32
    return %c0_i32, %c0_i32_0 : i32, i32
  }
  func.func @transform_4(%arg0: i32) -> (i32, i32) {
    %c0_i32 = arith.constant 0 : i32
    %c0_i32_0 = arith.constant 0 : i32
    %c0_i32_1 = arith.constant 0 : i32
    return %c0_i32, %c0_i32_0 : i32, i32
  }
  func.func @transform_5(%arg0: i32) -> (i32, i32) {
    %c0_i32 = arith.constant 0 : i32
    %c0_i32_0 = arith.constant 0 : i32
    %c0_i32_1 = arith.constant 0 : i32
    return %c0_i32, %c0_i32_0 : i32, i32
  }
  func.func @transform_6(%arg0: i32) -> (i32, i32) {
    %c0_i32 = arith.constant 0 : i32
    %c0_i32_0 = arith.constant 0 : i32
    %c0_i32_1 = arith.constant 0 : i32
    return %c0_i32, %c0_i32_0 : i32, i32
  }
  func.func @transform_7(%arg0: i32) -> (i32, i32) {
    %c0_i32 = arith.constant 0 : i32
    %c0_i32_0 = arith.constant 0 : i32
    %c0_i32_1 = arith.constant 0 : i32
    return %c0_i32, %c0_i32_0 : i32, i32
  }
  func.func @transform_8(%arg0: i32) -> (i32, i32) {
    %c0_i32 = arith.constant 0 : i32
    %c0_i32_0 = arith.constant 0 : i32
    %c0_i32_1 = arith.constant 0 : i32
    return %c0_i32, %c0_i32_0 : i32, i32
  }
  func.func @transform_9(%arg0: i32) -> (i32, i32) {
    %c0_i32 = arith.constant 0 : i32
    %c0_i32_0 = arith.constant 0 : i32
    return %c0_i32, %arg0 : i32, i32
  }
}

</mosaic_0001>

<llo_original>
// kernel: tpu_custom_call.1
$region0: #{tpu_custom_call.1}
  #allocation0 [shape = 'u32[]', space=smem, size = 0x4, offset = 0x4, fixed_abs, tag = 'smem constant byte address 0x4 - core index']
  #allocation1 [shape = 'u32[144,128]{1,0:T(1,128)}', space=vmem, size = 0x12000, scoped, tag = 'internal scratch']
  %s0 = inlined_call_operand.hbm [shape: f32[16,32], index: 0, kind: input, shape index: {}]
  %s1 = inlined_call_operand.hbm [shape: bf16[32,256], index: 1, kind: input, shape index: {}]
  %s2 = inlined_call_operand.vmem [shape: f32[1,256], index: 2, kind: input, shape index: {}]
  %s3 = inlined_call_operand.hbm [shape: bf16[256,256], index: 3, kind: input, shape index: {}]
  %s4 = inlined_call_operand.vmem [shape: f32[1,256], index: 4, kind: input, shape index: {}]
  %s5 = inlined_call_operand.hbm [shape: bf16[256,256], index: 5, kind: input, shape index: {}]
  %s6 = inlined_call_operand.vmem [shape: f32[1,256], index: 6, kind: input, shape index: {}]
  %s7 = inlined_call_operand.vmem [shape: f32[8,256], index: 7, kind: input, shape index: {}]
  %s8 = inlined_call_operand.vmem [shape: f32[8,1], index: 8, kind: input, shape index: {}]
  %s9 = inlined_call_operand.hbm [shape: f32[8,16], index: 9, kind: output, shape index: {}]
  %s10 = sld [smem:[#allocation0]]
  $region62: #{tpu_custom_call.1} parent=0
    _
  %s12 = ssub.s32 1, %s10
  %s13 = scalar_select 0, %s12, %s10
  $region1: #{tpu_custom_call.1} parent=0
    #allocation2 [shape = 'u8[8192]{0}', space=vmem, size = 0x2000, scoped, tag = 'input window, operand 0, single buffered']
    #allocation3 [shape = 's32[1]{0}', space=sflag, size = 0x4, scoped, tag = 'scoped memory for tpu_custom_call.1']
    #allocation4 [shape = 's32[1]{0}', space=sflag, size = 0x4, scoped, tag = 'scoped memory for tpu_custom_call.1']
    #allocation5 [shape = 'u8[16384]{0}', space=vmem, size = 0x4000, scoped, tag = 'input window, operand 1, single buffered']
    #allocation6 [shape = 's32[1]{0}', space=sflag, size = 0x4, scoped, tag = 'scoped memory for tpu_custom_call.1']
    #allocation7 [shape = 'u8[131072]{0}', space=vmem, size = 0x20000, scoped, tag = 'input window, operand 3, single buffered']
    #allocation8 [shape = 'u8[131072]{0}', space=vmem, size = 0x20000, scoped, tag = 'input window, operand 5, single buffered']
    #allocation9 [shape = 's32[1]{0}', space=sflag, size = 0x4, scoped, tag = 'scoped memory for tpu_custom_call.1']
    #allocation10 [shape = 'u8[4096]{0}', space=vmem, size = 0x1000, scoped, tag = 'output window, operand 0, single buffered']
    %14 = vsyncpa [#allocation3], 0
    %15 = vsyncpa [#allocation6], 0
    %16 = vsyncpa [#allocation9], 0
    %17 = vsyncpa [#allocation4], 0
    // Predicated region
    $region2: #{tpu_custom_call.1} parent=1 // pred_check
      _
    $region3: #{tpu_custom_call.1} parent=1 // pred_check_branch
      %19 = sbr.rel (0) target = $region5
    $region4: #{tpu_custom_call.1} parent=1 // pred_region
      %s21 = ssub.s32 256, 256
      %22 = vsyncadd [#allocation3], %s21
      %s23 = sshll.u32 [#allocation2], 4
      %s24 = int_to_ptr.vmem [resolvable:$true] %s23
      %29 = dma.hbm_to_vmem [thread:$0]  %s0, 256, %s24, [#allocation3], 128, 128, 8
    $region5: #{tpu_custom_call.1} parent=1 // pred_fallthru
      _
    // Predicated region
    $region6: #{tpu_custom_call.1} parent=1 // pred_check
      _
    $region7: #{tpu_custom_call.1} parent=1 // pred_check_branch
      %31 = sbr.rel (0) target = $region9
    $region8: #{tpu_custom_call.1} parent=1 // pred_region
      %s33 = ssub.s32 512, 512
      %34 = vsyncadd [#allocation6], %s33
      %s35 = sshll.u32 [#allocation5], 4
      %s36 = int_to_ptr.vmem [resolvable:$true] %s35
      %41 = dma.hbm_to_vmem [thread:$0]  %s1, 512, %s36, [#allocation6], 128, 128, 8
    $region9: #{tpu_custom_call.1} parent=1 // pred_fallthru
      _
    // Predicated region
    $region10: #{tpu_custom_call.1} parent=1 // pred_check
      _
    $region11: #{tpu_custom_call.1} parent=1 // pred_check_branch
      %43 = sbr.rel (0) target = $region13
    $region12: #{tpu_custom_call.1} parent=1 // pred_region
      _
    $region13: #{tpu_custom_call.1} parent=1 // pred_fallthru
      _
    // Predicated region
    $region14: #{tpu_custom_call.1} parent=1 // pred_check
      _
    $region15: #{tpu_custom_call.1} parent=1 // pred_check_branch
      %45 = sbr.rel (0) target = $region17
    $region16: #{tpu_custom_call.1} parent=1 // pred_region
      %s47 = ssub.s32 4096, 4096
      %48 = vsyncadd [#allocation6], %s47
      %s49 = sshll.u32 [#allocation7], 4
      %s50 = int_to_ptr.vmem [resolvable:$true] %s49
      %55 = dma.hbm_to_vmem [thread:$0]  %s3, 4096, %s50, [#allocation6], 128, 128, 8
    $region17: #{tpu_custom_call.1} parent=1 // pred_fallthru
      _
    // Predicated region
    $region18: #{tpu_custom_call.1} parent=1 // pred_check
      _
    $region19: #{tpu_custom_call.1} parent=1 // pred_check_branch
      %57 = sbr.rel (0) target = $region21
    $region20: #{tpu_custom_call.1} parent=1 // pred_region
      _
    $region21: #{tpu_custom_call.1} parent=1 // pred_fallthru
      _
    // Predicated region
    $region22: #{tpu_custom_call.1} parent=1 // pred_check
      _
    $region23: #{tpu_custom_call.1} parent=1 // pred_check_branch
      %59 = sbr.rel (0) target = $region25
    $region24: #{tpu_custom_call.1} parent=1 // pred_region
      %s61 = ssub.s32 4096, 4096
      %62 = vsyncadd [#allocation9], %s61
      %s63 = sshll.u32 [#allocation8], 4
      %s64 = int_to_ptr.vmem [resolvable:$true] %s63
      %69 = dma.hbm_to_vmem [thread:$0]  %s5, 4096, %s64, [#allocation9], 128, 128, 8
    $region25: #{tpu_custom_call.1} parent=1 // pred_fallthru
      _
    // Predicated region
    $region26: #{tpu_custom_call.1} parent=1 // pred_check
      _
    $region27: #{tpu_custom_call.1} parent=1 // pred_check_branch
      %71 = sbr.rel (0) target = $region29
    $region28: #{tpu_custom_call.1} parent=1 // pred_region
      _
    $region29: #{tpu_custom_call.1} parent=1 // pred_fallthru
      _
    // Predicated region
    $region30: #{tpu_custom_call.1} parent=1 // pred_check
      _
    $region31: #{tpu_custom_call.1} parent=1 // pred_check_branch
      %73 = sbr.rel (0) target = $region33
    $region32: #{tpu_custom_call.1} parent=1 // pred_region
      _
    $region33: #{tpu_custom_call.1} parent=1 // pred_fallthru
      _
    // Predicated region
    $region34: #{tpu_custom_call.1} parent=1 // pred_check
      _
    $region35: #{tpu_custom_call.1} parent=1 // pred_check_branch
      %75 = sbr.rel (0) target = $region37
    $region36: #{tpu_custom_call.1} parent=1 // pred_region
      _
    $region37: #{tpu_custom_call.1} parent=1 // pred_fallthru
      _
    // Predicated region
    $region38: #{tpu_custom_call.1} parent=1 // pred_check
      _
    $region39: #{tpu_custom_call.1} parent=1 // pred_check_branch
      %77 = sbr.rel (0) target = $region41
    $region40: #{tpu_custom_call.1} parent=1 // pred_region
      %78 = dma.done [#allocation3], 256
    $region41: #{tpu_custom_call.1} parent=1 // pred_fallthru
      _
    // Predicated region
    $region42: #{tpu_custom_call.1} parent=1 // pred_check
      _
    $region43: #{tpu_custom_call.1} parent=1 // pred_check_branch
      %80 = sbr.rel (0) target = $region45
    $region44: #{tpu_custom_call.1} parent=1 // pred_region
      %81 = dma.done [#allocation6], 512
    $region45: #{tpu_custom_call.1} parent=1 // pred_fallthru
      _
    // Predicated region
    $region46: #{tpu_custom_call.1} parent=1 // pred_check
      _
    $region47: #{tpu_custom_call.1} parent=1 // pred_check_branch
      %83 = sbr.rel (0) target = $region49
    $region48: #{tpu_custom_call.1} parent=1 // pred_region
      %84 = dma.done [#allocation6], 4096
    $region49: #{tpu_custom_call.1} parent=1 // pred_fallthru
      _
    // Predicated region
    $region50: #{tpu_custom_call.1} parent=1 // pred_check
      _
    $region51: #{tpu_custom_call.1} parent=1 // pred_check_branch
      %86 = sbr.rel (0) target = $region53
    $region52: #{tpu_custom_call.1} parent=1 // pred_region
      %87 = dma.done [#allocation9], 4096
    $region53: #{tpu_custom_call.1} parent=1 // pred_fallthru
      _
    %v89 = vld [vmem:[#allocation2] sm:$0xff]
    %v90 = vld [vmem:[#allocation2 + $0x8] sm:$0xff]
    %v91 = vpack.c.bf16 %v90, %v89
    %v92 = vld [vmem:[#allocation5] sm:$0xff]
    %v93 = vld [vmem:[#allocation5 + $0x8] sm:$0xff]
    %v94 = vld [vmem:[#allocation5 + $0x10] sm:$0xff]
    %v95 = vld [vmem:[#allocation5 + $0x18] sm:$0xff]
    %v96 = vld [vmem:[%s2] sm:$0x3]
    %v98 = vlaneseq
    %v99 = vshrl.u32 %v98, 7
    %v100 = vsub.s32 0, %v99
    %v101 = vrot.slane %v96, %v100
    %v102 = vlaneseq
    %v103 = vshrl.u32 %v102, 7
    %v104 = vsub.s32 1, %v103
    %v105 = vrot.slane %v96, %v104
    %v112 = vunpack.c.l.b16 %v92
    %v113 = vunpack.c.h.b16 %v92
    %v114 = vunpack.c.l.b16 %v93
    %v115 = vunpack.c.h.b16 %v93
    %v116 = vunpack.c.l.b16 %v94
    %v117 = vunpack.c.h.b16 %v94
    %v118 = vunpack.c.l.b16 %v95
    %v119 = vunpack.c.h.b16 %v95
    %v120 = vpack.c.b16 %v114, %v112
    %v121 = vpack.c.b16 %v115, %v113
    %v122 = vpack.c.b16 %v118, %v116
    %v123 = vpack.c.b16 %v119, %v117
    %vm128 = vcmask 261120
    %v130 = vsel %vm128, %v91, 0
    %132 = vmatprep.subr.bf16.mxu0 %v121
    %133 = vmatpush1.bf16.msra.mxu0 %v120
    %134 = vmatprep.subr.bf16.mxu0 %v123
    %135 = vmatpush1.bf16.msra.mxu0 %v122
    %136 = vmatprep.subr.bf16.mxu0 0
    %137 = vmatpush1.bf16.msra.mxu0 0
    %138 = vmatprep.subr.bf16.mxu0 0
    %139 = vmatpush1.bf16.msra.mxu0 0
    %140 = vmatprep.subr.bf16.mxu0 0
    %141 = vmatpush1.bf16.msra.mxu0 0
    %142 = vmatprep.subr.bf16.mxu0 0
    %143 = vmatpush1.bf16.msra.mxu0 0
    %144 = vmatprep.subr.bf16.mxu0 0
    %145 = vmatpush1.bf16.msra.mxu0 0
    %146 = vmatprep.subr.bf16.mxu0 0
    %147 = vmatpush1.bf16.msra.mxu0 0
    %148 = vmatprep.subr.bf16.mxu0 0
    %149 = vmatpush1.bf16.msra.mxu0 0
    %150 = vmatprep.subr.bf16.mxu0 0
    %151 = vmatpush1.bf16.msra.mxu0 0
    %152 = vmatprep.subr.bf16.mxu0 0
    %153 = vmatpush1.bf16.msra.mxu0 0
    %154 = vmatprep.subr.bf16.mxu0 0
    %155 = vmatpush1.bf16.msra.mxu0 0
    %156 = vmatprep.subr.bf16.mxu0 0
    %157 = vmatpush1.bf16.msra.mxu0 0
    %158 = vmatprep.subr.bf16.mxu0 0
    %159 = vmatpush1.bf16.msra.mxu0 0
    %160 = vmatprep.subr.bf16.mxu0 0
    %161 = vmatpush1.bf16.msra.mxu0 0
    %162 = vmatprep.subr.bf16.mxu0 0
    %163 = vmatpush1.bf16.msra.mxu0 0
    %164 = vmatprep.mubr.bf16.mxu0 0
    %165 = vmatmul.mubr.bf16.gmra.mrb[0].mxu0 %v130
    %v166 = vpop.f32.mrb[0].mxu0
    %v167 = vadd.f32 %v101, %v166
    %v168 = vpop.f32.mrb[0].mxu0
    %v169 = vadd.f32 %v105, %v168
    %v170 = vpop.f32.mrb[0].mxu0
    %v171 = vadd.f32 %v101, %v170
    %v172 = vpop.f32.mrb[0].mxu0
    %v173 = vadd.f32 %v105, %v172
    %174 = vdwg.mxu0
    %v175 = vmax.f32 %v167, 0.0
    %v176 = vmax.f32 %v169, 0.0
    %v177 = vmax.f32 %v171, 0.0
    %v178 = vmax.f32 %v173, 0.0
    %v179 = vpack.c.bf16 %v177, %v175
    %v180 = vpack.c.bf16 %v178, %v176
    %v181 = vld [vmem:[#allocation7] sm:$0xff]
    %v182 = vld [vmem:[#allocation7 + $0x8] sm:$0xff]
    %v183 = vld [vmem:[#allocation7 + $0x10] sm:$0xff]
    %v184 = vld [vmem:[#allocation7 + $0x18] sm:$0xff]
    %v185 = vld [vmem:[#allocation7 + $0x20] sm:$0xff]
    %v186 = vld [vmem:[#allocation7 + $0x28] sm:$0xff]
    %v187 = vld [vmem:[#allocation7 + $0x30] sm:$0xff]
    %v188 = vld [vmem:[#allocation7 + $0x38] sm:$0xff]
    %v189 = vld [vmem:[#allocation7 + $0x40] sm:$0xff]
    %v190 = vld [vmem:[#allocation7 + $0x48] sm:$0xff]
    %v191 = vld [vmem:[#allocation7 + $0x50] sm:$0xff]
    %v192 = vld [vmem:[#allocation7 + $0x58] sm:$0xff]
    %v193 = vld [vmem:[#allocation7 + $0x60] sm:$0xff]
    %v194 = vld [vmem:[#allocation7 + $0x68] sm:$0xff]
    %v195 = vld [vmem:[#allocation7 + $0x70] sm:$0xff]
    %v196 = vld [vmem:[#allocation7 + $0x78] sm:$0xff]
    %v197 = vld [vmem:[#allocation7 + $0x80] sm:$0xff]
    %v198 = vld [vmem:[#allocation7 + $0x88] sm:$0xff]
    %v199 = vld [vmem:[#allocation7 + $0x90] sm:$0xff]
    %v200 = vld [vmem:[#allocation7 + $0x98] sm:$0xff]
    %v201 = vld [vmem:[#allocation7 + $0xa0] sm:$0xff]
    %v202 = vld [vmem:[#allocation7 + $0xa8] sm:$0xff]
    %v203 = vld [vmem:[#allocation7 + $0xb0] sm:$0xff]
    %v204 = vld [vmem:[#allocation7 + $0xb8] sm:$0xff]
    %v205 = vld [vmem:[#allocation7 + $0xc0] sm:$0xff]
    %v206 = vld [vmem:[#allocation7 + $0xc8] sm:$0xff]
    %v207 = vld [vmem:[#allocation7 + $0xd0] sm:$0xff]
    %v208 = vld [vmem:[#allocation7 + $0xd8] sm:$0xff]
    %v209 = vld [vmem:[#allocation7 + $0xe0] sm:$0xff]
    %v210 = vld [vmem:[#allocation7 + $0xe8] sm:$0xff]
    %v211 = vld [vmem:[#allocation7 + $0xf0] sm:$0xff]
    %v212 = vld [vmem:[#allocation7 + $0xf8] sm:$0xff]
    %v213 = vld [vmem:[%s4] sm:$0x3]
    %v215 = vlaneseq
    %v216 = vshrl.u32 %v215, 7
    %v217 = vsub.s32 0, %v216
    %v218 = vrot.slane %v213, %v217
    %v219 = vlaneseq
    %v220 = vshrl.u32 %v219, 7
    %v221 = vsub.s32 1, %v220
    %v222 = vrot.slane %v213, %v221
    %v257 = vunpack.c.l.b16 %v181
    %v258 = vunpack.c.h.b16 %v181
    %v259 = vunpack.c.l.b16 %v182
    %v260 = vunpack.c.h.b16 %v182
    %v261 = vunpack.c.l.b16 %v183
    %v262 = vunpack.c.h.b16 %v183
    %v263 = vunpack.c.l.b16 %v184
    %v264 = vunpack.c.h.b16 %v184
    %v265 = vunpack.c.l.b16 %v185
    %v266 = vunpack.c.h.b16 %v185
    %v267 = vunpack.c.l.b16 %v186
    %v268 = vunpack.c.h.b16 %v186
    %v269 = vunpack.c.l.b16 %v187
    %v270 = vunpack.c.h.b16 %v187
    %v271 = vunpack.c.l.b16 %v188
    %v272 = vunpack.c.h.b16 %v188
    %v273 = vunpack.c.l.b16 %v189
    %v274 = vunpack.c.h.b16 %v189
    %v275 = vunpack.c.l.b16 %v190
    %v276 = vunpack.c.h.b16 %v190
    %v277 = vunpack.c.l.b16 %v191
    %v278 = vunpack.c.h.b16 %v191
    %v279 = vunpack.c.l.b16 %v192
    %v280 = vunpack.c.h.b16 %v192
    %v281 = vunpack.c.l.b16 %v193
    %v282 = vunpack.c.h.b16 %v193
    %v283 = vunpack.c.l.b16 %v194
    %v284 = vunpack.c.h.b16 %v194
    %v285 = vunpack.c.l.b16 %v195
    %v286 = vunpack.c.h.b16 %v195
    %v287 = vunpack.c.l.b16 %v196
    %v288 = vunpack.c.h.b16 %v196
    %v289 = vunpack.c.l.b16 %v197
    %v290 = vunpack.c.h.b16 %v197
    %v291 = vunpack.c.l.b16 %v198
    %v292 = vunpack.c.h.b16 %v198
    %v293 = vunpack.c.l.b16 %v199
    %v294 = vunpack.c.h.b16 %v199
    %v295 = vunpack.c.l.b16 %v200
    %v296 = vunpack.c.h.b16 %v200
    %v297 = vunpack.c.l.b16 %v201
    %v298 = vunpack.c.h.b16 %v201
    %v299 = vunpack.c.l.b16 %v202
    %v300 = vunpack.c.h.b16 %v202
    %v301 = vunpack.c.l.b16 %v203
    %v302 = vunpack.c.h.b16 %v203
    %v303 = vunpack.c.l.b16 %v204
    %v304 = vunpack.c.h.b16 %v204
    %v305 = vunpack.c.l.b16 %v205
    %v306 = vunpack.c.h.b16 %v205
    %v307 = vunpack.c.l.b16 %v206
    %v308 = vunpack.c.h.b16 %v206
    %v309 = vunpack.c.l.b16 %v207
    %v310 = vunpack.c.h.b16 %v207
    %v311 = vunpack.c.l.b16 %v208
    %v312 = vunpack.c.h.b16 %v208
    %v313 = vunpack.c.l.b16 %v209
    %v314 = vunpack.c.h.b16 %v209
    %v315 = vunpack.c.l.b16 %v210
    %v316 = vunpack.c.h.b16 %v210
    %v317 = vunpack.c.l.b16 %v211
    %v318 = vunpack.c.h.b16 %v211
    %v319 = vunpack.c.l.b16 %v212
    %v320 = vunpack.c.h.b16 %v212
    %v321 = vpack.c.b16 %v259, %v257
    %v322 = vpack.c.b16 %v260, %v258
    %v323 = vpack.c.b16 %v263, %v261
    %v324 = vpack.c.b16 %v264, %v262
    %v325 = vpack.c.b16 %v267, %v265
    %v326 = vpack.c.b16 %v268, %v266
    %v327 = vpack.c.b16 %v271, %v269
    %v328 = vpack.c.b16 %v272, %v270
    %v329 = vpack.c.b16 %v275, %v273
    %v330 = vpack.c.b16 %v276, %v274
    %v331 = vpack.c.b16 %v279, %v277
    %v332 = vpack.c.b16 %v280, %v278
    %v333 = vpack.c.b16 %v283, %v281
    %v334 = vpack.c.b16 %v284, %v282
    %v335 = vpack.c.b16 %v287, %v285
    %v336 = vpack.c.b16 %v288, %v286
    %v337 = vpack.c.b16 %v291, %v289
    %v338 = vpack.c.b16 %v292, %v290
    %v339 = vpack.c.b16 %v295, %v293
    %v340 = vpack.c.b16 %v296, %v294
    %v341 = vpack.c.b16 %v299, %v297
    %v342 = vpack.c.b16 %v300, %v298
    %v343 = vpack.c.b16 %v303, %v301
    %v344 = vpack.c.b16 %v304, %v302
    %v345 = vpack.c.b16 %v307, %v305
    %v346 = vpack.c.b16 %v308, %v306
    %v347 = vpack.c.b16 %v311, %v309
    %v348 = vpack.c.b16 %v312, %v310
    %v349 = vpack.c.b16 %v315, %v313
    %v350 = vpack.c.b16 %v316, %v314
    %v351 = vpack.c.b16 %v319, %v317
    %v352 = vpack.c.b16 %v320, %v318
    %385 = vmatprep.subr.bf16.mxu0 %v322
    %386 = vmatpush1.bf16.msra.mxu0 %v321
    %387 = vmatprep.subr.bf16.mxu0 %v324
    %388 = vmatpush1.bf16.msra.mxu0 %v323
    %389 = vmatprep.subr.bf16.mxu0 %v326
    %390 = vmatpush1.bf16.msra.mxu0 %v325
    %391 = vmatprep.subr.bf16.mxu0 %v328
    %392 = vmatpush1.bf16.msra.mxu0 %v327
    %393 = vmatprep.subr.bf16.mxu0 %v330
    %394 = vmatpush1.bf16.msra.mxu0 %v329
    %395 = vmatprep.subr.bf16.mxu0 %v332
    %396 = vmatpush1.bf16.msra.mxu0 %v331
    %397 = vmatprep.subr.bf16.mxu0 %v334
    %398 = vmatpush1.bf16.msra.mxu0 %v333
    %399 = vmatprep.subr.bf16.mxu0 %v336
    %400 = vmatpush1.bf16.msra.mxu0 %v335
    %401 = vmatprep.subr.bf16.mxu0 %v338
    %402 = vmatpush1.bf16.msra.mxu0 %v337
    %403 = vmatprep.subr.bf16.mxu0 %v340
    %404 = vmatpush1.bf16.msra.mxu0 %v339
    %405 = vmatprep.subr.bf16.mxu0 %v342
    %406 = vmatpush1.bf16.msra.mxu0 %v341
    %407 = vmatprep.subr.bf16.mxu0 %v344
    %408 = vmatpush1.bf16.msra.mxu0 %v343
    %409 = vmatprep.subr.bf16.mxu0 %v346
    %410 = vmatpush1.bf16.msra.mxu0 %v345
    %411 = vmatprep.subr.bf16.mxu0 %v348
    %412 = vmatpush1.bf16.msra.mxu0 %v347
    %413 = vmatprep.subr.bf16.mxu0 %v350
    %414 = vmatpush1.bf16.msra.mxu0 %v349
    %415 = vmatprep.subr.bf16.mxu0 %v352
    %416 = vmatpush1.bf16.msra.mxu0 %v351
    %417 = vmatprep.mubr.bf16.mxu0 %v180
    %418 = vmatmul.mubr.bf16.gmra.mrb[0].mxu0 %v179
    %v419 = vpop.f32.mrb[0].mxu0
    %v420 = vadd.f32 %v218, %v419
    %v421 = vpop.f32.mrb[0].mxu0
    %v422 = vadd.f32 %v222, %v421
    %v423 = vpop.f32.mrb[0].mxu0
    %v424 = vadd.f32 %v218, %v423
    %v425 = vpop.f32.mrb[0].mxu0
    %v426 = vadd.f32 %v222, %v425
    %427 = vdwg.mxu0
    %v428 = vmax.f32 %v420, 0.0
    %v429 = vmax.f32 %v422, 0.0
    %v430 = vmax.f32 %v424, 0.0
    %v431 = vmax.f32 %v426, 0.0
    %v432 = vpack.c.bf16 %v430, %v428
    %v433 = vpack.c.bf16 %v431, %v429
    %v434 = vld [vmem:[#allocation8] sm:$0xff]
    %v435 = vld [vmem:[#allocation8 + $0x8] sm:$0xff]
    %v436 = vld [vmem:[#allocation8 + $0x10] sm:$0xff]
    %v437 = vld [vmem:[#allocation8 + $0x18] sm:$0xff]
    %v438 = vld [vmem:[#allocation8 + $0x20] sm:$0xff]
    %v439 = vld [vmem:[#allocation8 + $0x28] sm:$0xff]
    %v440 = vld [vmem:[#allocation8 + $0x30] sm:$0xff]
    %v441 = vld [vmem:[#allocation8 + $0x38] sm:$0xff]
    %v442 = vld [vmem:[#allocation8 + $0x40] sm:$0xff]
    %v443 = vld [vmem:[#allocation8 + $0x48] sm:$0xff]
    %v444 = vld [vmem:[#allocation8 + $0x50] sm:$0xff]
    %v445 = vld [vmem:[#allocation8 + $0x58] sm:$0xff]
    %v446 = vld [vmem:[#allocation8 + $0x60] sm:$0xff]
    %v447 = vld [vmem:[#allocation8 + $0x68] sm:$0xff]
    %v448 = vld [vmem:[#allocation8 + $0x70] sm:$0xff]
    %v449 = vld [vmem:[#allocation8 + $0x78] sm:$0xff]
    %v450 = vld [vmem:[#allocation8 + $0x80] sm:$0xff]
    %v451 = vld [vmem:[#allocation8 + $0x88] sm:$0xff]
    %v452 = vld [vmem:[#allocation8 + $0x90] sm:$0xff]
    %v453 = vld [vmem:[#allocation8 + $0x98] sm:$0xff]
    %v454 = vld [vmem:[#allocation8 + $0xa0] sm:$0xff]
    %v455 = vld [vmem:[#allocation8 + $0xa8] sm:$0xff]
    %v456 = vld [vmem:[#allocation8 + $0xb0] sm:$0xff]
    %v457 = vld [vmem:[#allocation8 + $0xb8] sm:$0xff]
    %v458 = vld [vmem:[#allocation8 + $0xc0] sm:$0xff]
    %v459 = vld [vmem:[#allocation8 + $0xc8] sm:$0xff]
    %v460 = vld [vmem:[#allocation8 + $0xd0] sm:$0xff]
    %v461 = vld [vmem:[#allocation8 + $0xd8] sm:$0xff]
    %v462 = vld [vmem:[#allocation8 + $0xe0] sm:$0xff]
    %v463 = vld [vmem:[#allocation8 + $0xe8] sm:$0xff]
    %v464 = vld [vmem:[#allocation8 + $0xf0] sm:$0xff]
    %v465 = vld [vmem:[#allocation8 + $0xf8] sm:$0xff]
    %v466 = vld [vmem:[%s6] sm:$0x3]
    %v468 = vlaneseq
    %v469 = vshrl.u32 %v468, 7
    %v470 = vsub.s32 0, %v469
    %v471 = vrot.slane %v466, %v470
    %v472 = vlaneseq
    %v473 = vshrl.u32 %v472, 7
    %v474 = vsub.s32 1, %v473
    %v475 = vrot.slane %v466, %v474
    %v510 = vunpack.c.l.b16 %v434
    %v511 = vunpack.c.h.b16 %v434
    %v512 = vunpack.c.l.b16 %v435
    %v513 = vunpack.c.h.b16 %v435
    %v514 = vunpack.c.l.b16 %v436
    %v515 = vunpack.c.h.b16 %v436
    %v516 = vunpack.c.l.b16 %v437
    %v517 = vunpack.c.h.b16 %v437
    %v518 = vunpack.c.l.b16 %v438
    %v519 = vunpack.c.h.b16 %v438
    %v520 = vunpack.c.l.b16 %v439
    %v521 = vunpack.c.h.b16 %v439
    %v522 = vunpack.c.l.b16 %v440
    %v523 = vunpack.c.h.b16 %v440
    %v524 = vunpack.c.l.b16 %v441
    %v525 = vunpack.c.h.b16 %v441
    %v526 = vunpack.c.l.b16 %v442
    %v527 = vunpack.c.h.b16 %v442
    %v528 = vunpack.c.l.b16 %v443
    %v529 = vunpack.c.h.b16 %v443
    %v530 = vunpack.c.l.b16 %v444
    %v531 = vunpack.c.h.b16 %v444
    %v532 = vunpack.c.l.b16 %v445
    %v533 = vunpack.c.h.b16 %v445
    %v534 = vunpack.c.l.b16 %v446
    %v535 = vunpack.c.h.b16 %v446
    %v536 = vunpack.c.l.b16 %v447
    %v537 = vunpack.c.h.b16 %v447
    %v538 = vunpack.c.l.b16 %v448
    %v539 = vunpack.c.h.b16 %v448
    %v540 = vunpack.c.l.b16 %v449
    %v541 = vunpack.c.h.b16 %v449
    %v542 = vunpack.c.l.b16 %v450
    %v543 = vunpack.c.h.b16 %v450
    %v544 = vunpack.c.l.b16 %v451
    %v545 = vunpack.c.h.b16 %v451
    %v546 = vunpack.c.l.b16 %v452
    %v547 = vunpack.c.h.b16 %v452
    %v548 = vunpack.c.l.b16 %v453
    %v549 = vunpack.c.h.b16 %v453
    %v550 = vunpack.c.l.b16 %v454
    %v551 = vunpack.c.h.b16 %v454
    %v552 = vunpack.c.l.b16 %v455
    %v553 = vunpack.c.h.b16 %v455
    %v554 = vunpack.c.l.b16 %v456
    %v555 = vunpack.c.h.b16 %v456
    %v556 = vunpack.c.l.b16 %v457
    %v557 = vunpack.c.h.b16 %v457
    %v558 = vunpack.c.l.b16 %v458
    %v559 = vunpack.c.h.b16 %v458
    %v560 = vunpack.c.l.b16 %v459
    %v561 = vunpack.c.h.b16 %v459
    %v562 = vunpack.c.l.b16 %v460
    %v563 = vunpack.c.h.b16 %v460
    %v564 = vunpack.c.l.b16 %v461
    %v565 = vunpack.c.h.b16 %v461
    %v566 = vunpack.c.l.b16 %v462
    %v567 = vunpack.c.h.b16 %v462
    %v568 = vunpack.c.l.b16 %v463
    %v569 = vunpack.c.h.b16 %v463
    %v570 = vunpack.c.l.b16 %v464
    %v571 = vunpack.c.h.b16 %v464
    %v572 = vunpack.c.l.b16 %v465
    %v573 = vunpack.c.h.b16 %v465
    %v574 = vpack.c.b16 %v512, %v510
    %v575 = vpack.c.b16 %v513, %v511
    %v576 = vpack.c.b16 %v516, %v514
    %v577 = vpack.c.b16 %v517, %v515
    %v578 = vpack.c.b16 %v520, %v518
    %v579 = vpack.c.b16 %v521, %v519
    %v580 = vpack.c.b16 %v524, %v522
    %v581 = vpack.c.b16 %v525, %v523
    %v582 = vpack.c.b16 %v528, %v526
    %v583 = vpack.c.b16 %v529, %v527
    %v584 = vpack.c.b16 %v532, %v530
    %v585 = vpack.c.b16 %v533, %v531
    %v586 = vpack.c.b16 %v536, %v534
    %v587 = vpack.c.b16 %v537, %v535
    %v588 = vpack.c.b16 %v540, %v538
    %v589 = vpack.c.b16 %v541, %v539
    %v590 = vpack.c.b16 %v544, %v542
    %v591 = vpack.c.b16 %v545, %v543
    %v592 = vpack.c.b16 %v548, %v546
    %v593 = vpack.c.b16 %v549, %v547
    %v594 = vpack.c.b16 %v552, %v550
    %v595 = vpack.c.b16 %v553, %v551
    %v596 = vpack.c.b16 %v556, %v554
    %v597 = vpack.c.b16 %v557, %v555
    %v598 = vpack.c.b16 %v560, %v558
    %v599 = vpack.c.b16 %v561, %v559
    %v600 = vpack.c.b16 %v564, %v562
    %v601 = vpack.c.b16 %v565, %v563
    %v602 = vpack.c.b16 %v568, %v566
    %v603 = vpack.c.b16 %v569, %v567
    %v604 = vpack.c.b16 %v572, %v570
    %v605 = vpack.c.b16 %v573, %v571
    %638 = vmatprep.subr.bf16.mxu0 %v575
    %639 = vmatpush1.bf16.msra.mxu0 %v574
    %640 = vmatprep.subr.bf16.mxu0 %v577
    %641 = vmatpush1.bf16.msra.mxu0 %v576
    %642 = vmatprep.subr.bf16.mxu0 %v579
    %643 = vmatpush1.bf16.msra.mxu0 %v578
    %644 = vmatprep.subr.bf16.mxu0 %v581
    %645 = vmatpush1.bf16.msra.mxu0 %v580
    %646 = vmatprep.subr.bf16.mxu0 %v583
    %647 = vmatpush1.bf16.msra.mxu0 %v582
    %648 = vmatprep.subr.bf16.mxu0 %v585
    %649 = vmatpush1.bf16.msra.mxu0 %v584
    %650 = vmatprep.subr.bf16.mxu0 %v587
    %651 = vmatpush1.bf16.msra.mxu0 %v586
    %652 = vmatprep.subr.bf16.mxu0 %v589
    %653 = vmatpush1.bf16.msra.mxu0 %v588
    %654 = vmatprep.subr.bf16.mxu0 %v591
    %655 = vmatpush1.bf16.msra.mxu0 %v590
    %656 = vmatprep.subr.bf16.mxu0 %v593
    %657 = vmatpush1.bf16.msra.mxu0 %v592
    %658 = vmatprep.subr.bf16.mxu0 %v595
    %659 = vmatpush1.bf16.msra.mxu0 %v594
    %660 = vmatprep.subr.bf16.mxu0 %v597
    %661 = vmatpush1.bf16.msra.mxu0 %v596
    %662 = vmatprep.subr.bf16.mxu0 %v599
    %663 = vmatpush1.bf16.msra.mxu0 %v598
    %664 = vmatprep.subr.bf16.mxu0 %v601
    %665 = vmatpush1.bf16.msra.mxu0 %v600
    %666 = vmatprep.subr.bf16.mxu0 %v603
    %667 = vmatpush1.bf16.msra.mxu0 %v602
    %668 = vmatprep.subr.bf16.mxu0 %v605
    %669 = vmatpush1.bf16.msra.mxu0 %v604
    %670 = vmatprep.mubr.bf16.mxu0 %v433
    %671 = vmatmul.mubr.bf16.gmra.mrb[0].mxu0 %v432
    %v672 = vpop.f32.mrb[0].mxu0
    %v673 = vadd.f32 %v471, %v672
    %v674 = vpop.f32.mrb[0].mxu0
    %v675 = vadd.f32 %v475, %v674
    %v676 = vpop.f32.mrb[0].mxu0
    %v677 = vadd.f32 %v471, %v676
    %v678 = vpop.f32.mrb[0].mxu0
    %v679 = vadd.f32 %v475, %v678
    %680 = vdwg.mxu0
    %v681 = vmax.f32 %v673, 0.0
    %v682 = vmax.f32 %v675, 0.0
    %v683 = vmax.f32 %v677, 0.0
    %v684 = vmax.f32 %v679, 0.0
    %v685 = vld [vmem:[%s7] sm:$0xff]
    %v686 = vld [vmem:[%s7 + $0x8] sm:$0xff]
    %v687 = vld [vmem:[%s8] sm:$0xff]
    %689 = vset.pattern.permute.xlu0 0
    %690 = vperm.xlu0 %689, %v687
    %v691 = vpop.permute.xlu0 %690
    %693 = vmatprep.subr.mxu0 %v682
    %694 = vmatpush1.xpose.msra.mxu0 %v681
    %695 = vmatprep.subr.mxu0 %v684
    %696 = vmatpush1.xpose.msra.mxu0 %v683
    %697 = vmatprep.subr.mxu0 0.0
    %698 = vmatpush1.xpose.msra.mxu0 0.0
    %699 = vmatprep.subr.mxu0 0.0
    %700 = vmatpush1.xpose.msra.mxu0 0.0
    %701 = vmatprep.subr.mxu0 0.0
    %702 = vmatpush1.xpose.msra.mxu0 0.0
    %703 = vmatprep.subr.mxu0 0.0
    %704 = vmatpush1.xpose.msra.mxu0 0.0
    %705 = vmatprep.subr.mxu0 0.0
    %706 = vmatpush1.xpose.msra.mxu0 0.0
    %707 = vmatprep.subr.mxu0 0.0
    %708 = vmatpush1.xpose.msra.mxu0 0.0
    %709 = vmatprep.subr.mxu0 0.0
    %710 = vmatpush1.xpose.msra.mxu0 0.0
    %711 = vmatprep.subr.mxu0 0.0
    %712 = vmatpush1.xpose.msra.mxu0 0.0
    %713 = vmatprep.subr.mxu0 0.0
    %714 = vmatpush1.xpose.msra.mxu0 0.0
    %715 = vmatprep.subr.mxu0 0.0
    %716 = vmatpush1.xpose.msra.mxu0 0.0
    %717 = vmatprep.subr.mxu0 0.0
    %718 = vmatpush1.xpose.msra.mxu0 0.0
    %719 = vmatprep.subr.mxu0 0.0
    %720 = vmatpush1.xpose.msra.mxu0 0.0
    %721 = vmatprep.subr.mxu0 0.0
    %722 = vmatpush1.xpose.msra.mxu0 0.0
    %723 = vmatprep.subr.mxu0 0.0
    %724 = vmatpush1.xpose.msra.mxu0 0.0
    %725 = vmatprep.subr.mxu0 0.0
    %726 = vmatpush1.xpose.msra.mxu0 0.0
    %727 = vmatprep.subr.mxu0 0.0
    %728 = vmatpush1.xpose.msra.mxu0 0.0
    %729 = vmatprep.subr.mxu0 0.0
    %730 = vmatpush1.xpose.msra.mxu0 0.0
    %731 = vmatprep.subr.mxu0 0.0
    %732 = vmatpush1.xpose.msra.mxu0 0.0
    %733 = vmatprep.subr.mxu0 0.0
    %734 = vmatpush1.xpose.msra.mxu0 0.0
    %735 = vmatprep.subr.mxu0 0.0
    %736 = vmatpush1.xpose.msra.mxu0 0.0
    %737 = vmatprep.subr.mxu0 0.0
    %738 = vmatpush1.xpose.msra.mxu0 0.0
    %739 = vmatprep.subr.mxu0 0.0
    %740 = vmatpush1.xpose.msra.mxu0 0.0
    %741 = vmatprep.subr.mxu0 0.0
    %742 = vmatpush1.xpose.msra.mxu0 0.0
    %743 = vmatprep.subr.mxu0 0.0
    %744 = vmatpush1.xpose.msra.mxu0 0.0
    %745 = vmatprep.subr.mxu0 0.0
    %746 = vmatpush1.xpose.msra.mxu0 0.0
    %747 = vmatprep.subr.mxu0 0.0
    %748 = vmatpush1.xpose.msra.mxu0 0.0
    %749 = vmatprep.subr.mxu0 0.0
    %750 = vmatpush1.xpose.msra.mxu0 0.0
    %751 = vmatprep.subr.mxu0 0.0
    %752 = vmatpush1.xpose.msra.mxu0 0.0
    %753 = vmatprep.subr.mxu0 0.0
    %754 = vmatpush1.xpose.msra.mxu0 0.0
    %755 = vmatprep.subr.mxu0 0.0
    %756 = vmatpush1.xpose.msra.mxu0 0.0
    %757 = vmatprep.mubr.f32.mxu0 %v686
    %758 = vmatmul.mubr.f32.gmra.mrb[0].mxu0 %v685
    %v759 = vpop.f32.mrb[0].mxu0
    %v760 = vadd.f32 %v691, %v759
    %v761 = vpop.f32.mrb[0].mxu0
    %762 = vdwg.mxu0
    %vm763 = vcmask 130048
    %764 = vst.msk [vmem:[#allocation10] sm:$0xff] %vm763, %v760
    // Predicated region
    $region54: #{tpu_custom_call.1} parent=1 // pred_check
      _
    $region55: #{tpu_custom_call.1} parent=1 // pred_check_branch
      %766 = sbr.rel (0) target = $region57
    $region56: #{tpu_custom_call.1} parent=1 // pred_region
      %s768 = ssub.s32 128, 128
      %769 = vsyncadd [#allocation4], %s768
      %s771 = sshll.u32 [#allocation10], 4
      %s772 = int_to_ptr.vmem [resolvable:$true] %s771
      %774 = dma.vmem_to_hbm [thread:$0]  %s772, 128, %s9, [#allocation4]
    $region57: #{tpu_custom_call.1} parent=1 // pred_fallthru
      _
    // Predicated region
    $region58: #{tpu_custom_call.1} parent=1 // pred_check
      _
    $region59: #{tpu_custom_call.1} parent=1 // pred_check_branch
      %776 = sbr.rel (0) target = $region61
    $region60: #{tpu_custom_call.1} parent=1 // pred_region
      %777 = dma.done [#allocation4], 128
    $region61: #{tpu_custom_call.1} parent=1 // pred_fallthru
      _
    %778 = vsyncpa [#allocation3], 1
    %779 = vsyncpa [#allocation6], 1
    %780 = vsyncpa [#allocation9], 1
    %781 = vsyncpa [#allocation4], 1

</llo_original>
